<compile_context>
chip_gen: v7x
topology: tpu7x:2x2x1
jax: 0.10.0
libtpu: 0.0.40
codegen_flags: <defaults>
</compile_context>

<pallas_src>
import functools
import math

import jax
import jax.numpy as jnp
from jax import lax
from jax.experimental import pallas as pl
from jax.experimental.pallas import tpu as pltpu

_LANE = 128
_WIDTHS = (4096, 2048, 1024, 512, 256, 128)
_GOLDEN = 0x9E3779B9      # golden-ratio constant for seed mixing
_BLOCK_MIX = 0x85EBCA6B   # odd constant for block-id mixing

_TWO_PI = 2.0 * math.pi
# Taylor coefficients (in z = w*w) for cos(2*pi*w) / sin(2*pi*w), |w| <= 0.5.
# Max abs error ~1e-4 (cos) / ~2e-5 (sin): plenty for a noise regularizer, and
# the evaluation is just FMAs on the VPU (no libm trig expansion).
_COS_COEFFS = tuple((-1.0) ** k * _TWO_PI ** (2 * k) / math.factorial(2 * k)
                    for k in range(7))
_SIN_COEFFS = tuple((-1.0) ** k * _TWO_PI ** (2 * k + 1) / math.factorial(2 * k + 1)
                    for k in range(7))


def _hash_u32(x):
    """'lowbias32'-style integer hash: uint32 -> uint32 (VPU mul/xor/shift only)."""
    x = x ^ (x >> 16)
    x = x * jnp.uint32(0x7FEB352D)
    x = x ^ (x >> 15)
    x = x * jnp.uint32(0x846CA68B)
    x = x ^ (x >> 16)
    return x


def _block_keys(seed, count):
    """`count` decorrelated uint32 keys derived from (seed, block id), two hash rounds."""
    seed_u = jnp.asarray(seed, dtype=jnp.int32).astype(jnp.uint32)
    blk = jnp.arange(count, dtype=jnp.uint32)
    return _hash_u32(_hash_u32(seed_u * jnp.uint32(_GOLDEN)) ^ (blk * jnp.uint32(_BLOCK_MIX)))


def _cos_sin_2pi(w):
    """(cos(2*pi*w), sin(2*pi*w)) for w in [-0.5, 0.5] via short even/odd polynomials."""
    z = w * w
    c = _COS_COEFFS[-1]
    s = _SIN_COEFFS[-1]
    for ck, sk in zip(_COS_COEFFS[-2::-1], _SIN_COEFFS[-2::-1]):
        c = c * z + ck
        s = s * z + sk
    return c, s * w


def _uniforms_from_bits(bits):
    """One uint32 word -> two f32 uniforms in (0, 1), 16 random bits each."""
    hi = (bits >> 16).astype(jnp.int32)
    lo = (bits & jnp.uint32(0xFFFF)).astype(jnp.int32)
    u1 = (hi.astype(jnp.float32) + 0.5) * (2.0 ** -16)
    u2 = (lo.astype(jnp.float32) + 0.5) * (2.0 ** -16)
    return u1, u2


def _gaussian_pair(bits):
    """uint32 random words -> two independent ~N(0,1) arrays (Box-Muller, both branches)."""
    u1, u2 = _uniforms_from_bits(bits)
    r = jnp.sqrt(-2.0 * jnp.log(u1))           # Rayleigh magnitude (tail ~4.86 sigma)
    c, s = _cos_sin_2pi(u2 - 0.5)              # angle 2*pi*(u2-0.5), uniform in [-pi, pi)
    return r * c, r * s


def _gaussian_noise_kernel(keys_ref, x_ref, o_ref, *, sigma, log2_width, split_rows):
    block_rows, width = x_ref.shape

    # Per-block key (precomputed in the wrapper; seed and block id both hashed).
    key = keys_ref[pl.program_id(0)].astype(jnp.uint32)

    def bits_for(rows):
        row = lax.broadcasted_iota(jnp.int32, (rows, width), 0)
        col = lax.broadcasted_iota(jnp.int32, (rows, width), 1)
        idx = ((row << log2_width) | col).astype(jnp.uint32)
        return _hash_u32(idx ^ key)

    if split_rows:
        # One hash / log / sqrt per *pair* of outputs: cos branch -> top half rows,
        # sin branch -> bottom half rows. `half` is static and sublane-aligned.
        half = block_rows // 2
        g_cos, g_sin = _gaussian_pair(bits_for(half))
        x_hi = x_ref[0:half, :].astype(jnp.float32)
        x_lo = x_ref[half:block_rows, :].astype(jnp.float32)
        # out = x + (sigma*x)*g == x * (1 + sigma*g)
        o_ref[0:half, :] = (x_hi * (1.0 + sigma * g_cos)).astype(o_ref.dtype)
        o_ref[half:block_rows, :] = (x_lo * (1.0 + sigma * g_sin)).astype(o_ref.dtype)
    else:
        # Tiny-tensor fallback: full-block store, cos branch only.
        g, _ = _gaussian_pair(bits_for(block_rows))
        x = x_ref[...].astype(jnp.float32)
        o_ref[...] = (x * (1.0 + sigma * g)).astype(o_ref.dtype)


def _choose_tiling(n, itemsize):
    """(width, block_rows, grid, split_rows) for a flat tensor of n elements (n % 128 == 0)."""
    sub = max(8, 32 // itemsize)   # sublane tile for the dtype (f32:8, bf16:16, int8:32)
    pair = 2 * sub                 # row-split needs both halves sublane-aligned

    width = None
    for w in _WIDTHS:
        if n % w == 0 and n // w >= pair:
            width = w
            break
    if width is None:
        # Tiny tensor: single full-extent block (always a legal block shape),
        # single-branch kernel.  Perf is irrelevant at this size.
        for w in _WIDTHS:
            if n % w == 0:
                return w, n // w, 1, False

    rows = n // width

    # ~4 MiB per block (scaled by itemsize) amortizes the ~0.35 us/step grid
    # overhead; (in + out) double-buffered = 16 MiB < 32 MiB scoped-VMEM default.
    target_rows = max(pair, ((4 * 1024 * 1024) // (itemsize * width)) // pair * pair)
    block_rows = min(target_rows, (rows // pair) * pair)
    if n * itemsize > 256 * 1024:
        # Keep >= 2 grid steps so both v7x TensorCores get work.
        half_split = pl.cdiv((rows + 1) // 2, pair) * pair
        block_rows = min(block_rows, half_split)
    block_rows = max(block_rows, pair)
    grid = pl.cdiv(rows, block_rows)
    return width, block_rows, grid, True


def gaussian_noise(x, seed, *, sigma=0.1, training=True, is_relative_detach=True):
    """Forward pass of GaussianNoise. Identity when not training or sigma == 0."""
    del is_relative_detach  # affects autograd only; forward math is identical
    if (not training) or sigma == 0 or x.size == 0:
        return x

    orig_shape = x.shape
    n = x.size
    flat = x.reshape(-1)               # layout-only reshape for contiguous inputs
    n_main = (n // _LANE) * _LANE
    n_tail = n - n_main

    grid = 0
    pieces = []

    if n_main:
        width, block_rows, grid, split_rows = _choose_tiling(n_main, x.dtype.itemsize)
        rows = n_main // width
        main_in = flat if n_tail == 0 else flat[:n_main]
        x2d = main_in.reshape(rows, width)   # lane-dense 2D view, native dtype

        keys_i32 = _block_keys(seed, grid).astype(jnp.int32)  # bit-preserving (modular)
        kernel = functools.partial(
            _gaussian_noise_kernel,
            sigma=float(sigma),
            log2_width=width.bit_length() - 1,
            split_rows=split_rows,
        )
        out2d = pl.pallas_call(
            kernel,
            out_shape=jax.ShapeDtypeStruct((rows, width), x.dtype),
            grid_spec=pltpu.PrefetchScalarGridSpec(
                num_scalar_prefetch=1,       # per-block keys land in SMEM
                grid=(grid,),
                in_specs=[pl.BlockSpec((block_rows, width), lambda i, keys: (i, 0))],
                out_specs=pl.BlockSpec((block_rows, width), lambda i, keys: (i, 0)),
            ),
            compiler_params=pltpu.CompilerParams(
                dimension_semantics=("parallel",),
            ),
        )(keys_i32, x2d)
        pieces.append(out2d.reshape(-1))

    if n_tail:
        # Ragged tail (< 128 elems): same hash / Box-Muller math in plain jnp.
        # Replaces the old pad-whole-tensor + slice-whole-tensor round trip;
        # the only extra HBM traffic for ragged sizes is the final concatenate.
        tail = flat[n_main:]
        tail_key = _block_keys(seed, grid + 1)[grid]   # block id past the kernel's blocks
        npairs = (n_tail + 1) // 2
        bits = _hash_u32(jnp.arange(npairs, dtype=jnp.uint32) ^ tail_key)
        g0, g1 = _gaussian_pair(bits)
        g = jnp.concatenate([g0, g1])[:n_tail]
        noisy_tail = (tail.astype(jnp.float32) * (1.0 + float(sigma) * g)).astype(x.dtype)
        pieces.append(noisy_tail)

    out = pieces[0] if len(pieces) == 1 else jnp.concatenate(pieces)
    return out.reshape(orig_shape)


if __name__ == "__main__":
    key = jax.random.PRNGKey(0)
    x = jax.random.normal(key, (2, 4, 16, 16), dtype=jnp.float32)  # NCHW, 2048 elems

    y = jax.block_until_ready(gaussian_noise(x, seed=1234, sigma=0.1, training=True))
    assert y.shape == x.shape and y.dtype == x.dtype

    delta = y - x
    assert bool(jnp.isfinite(delta).all())
    # Perturbation = sigma * x * g with |g| <= ~4.86 by construction.
    assert float(jnp.abs(delta).max()) < 10.0

    # Recovered noise g = (y - x) / (sigma * x) should look like N(0, 1).
    safe = jnp.abs(x) > 1e-3
    g_rec = jnp.where(safe, (y - x) / (0.1 * jnp.where(safe, x, 1.0)), 0.0)
    cnt = jnp.sum(safe)
    g_mean = jnp.sum(g_rec) / cnt
    g_std = jnp.sqrt(jnp.sum(jnp.where(safe, (g_rec - g_mean) ** 2, 0.0)) / cnt)
    assert abs(float(g_mean)) < 0.2, float(g_mean)
    assert 0.7 < float(g_std) < 1.3, float(g_std)

    # Relative perturbation magnitude on the order of sigma.
    rel = jnp.abs(delta) / (jnp.abs(x) + 1e-6)
    assert 0.005 < float(rel.mean()) < 1.0

    # Eval mode and sigma == 0 are exact identity.
    y_eval = jax.block_until_ready(gaussian_noise(x, seed=1234, training=False))
    assert bool(jnp.array_equal(y_eval, x))
    y_zero = jax.block_until_ready(gaussian_noise(x, seed=1234, sigma=0.0, training=True))
    assert bool(jnp.array_equal(y_zero, x))

    # Different seeds give different noise.
    y2 = jax.block_until_ready(gaussian_noise(x, seed=1235, sigma=0.1, training=True))
    assert not bool(jnp.array_equal(y2, y))

    # Ragged sizes: pure-tail path (n < 128) and kernel + tail path (n % 128 != 0).
    xr = jax.random.normal(jax.random.PRNGKey(1), (3, 5, 7), dtype=jnp.float32)
    yr = jax.block_until_ready(gaussian_noise(xr, seed=7, sigma=0.1, training=True))
    assert yr.shape == xr.shape and bool(jnp.isfinite(yr).all())

    xm = jax.random.normal(jax.random.PRNGKey(2), (5, 130), dtype=jnp.float32)
    ym = jax.block_until_ready(gaussian_noise(xm, seed=9, sigma=0.1, training=True))
    assert ym.shape == xm.shape and bool(jnp.isfinite(ym).all())

    print("KERNEL_OK")
</pallas_src>

<mosaic_0001>
module attributes {stable_mosaic.version = 11 : i64} {
  func.func @_gaussian_noise_kernel(%arg0: i32, %arg1: memref<1xi32, #tpu.memory_space<smem>>, %arg2: memref<16x128xf32, #tpu.memory_space<vmem>>, %arg3: memref<16x128xf32, #tpu.memory_space<vmem>>) attributes {dimension_semantics = [#tpu.dimension_semantics<parallel>], iteration_bounds = array<i64: 1>, scalar_prefetch = 1 : i64, scratch_operands = 0 : i64, tpu.core_type = #tpu.core_type<tc>, window_params = [{transform_indices = @transform_0, window_bounds = array<i64: 16, 128>}, {transform_indices = @transform_1, window_bounds = array<i64: 16, 128>}]} {
    %0 = arith.index_cast %arg0 : i32 to index
    %1 = memref.load %arg1[%0] : memref<1xi32, #tpu.memory_space<smem>>
    %2 = tpu.iota {dimensions = array<i32: 0>} : vector<8x128xi32>
    %3 = tpu.iota {dimensions = array<i32: 1>} : vector<8x128xi32>
    %c7_i32 = arith.constant 7 : i32
    %4 = vector.broadcast %c7_i32 : i32 to vector<8x128xi32>
    %5 = arith.shli %2, %4 : vector<8x128xi32>
    %6 = arith.ori %5, %3 : vector<8x128xi32>
    %7 = vector.broadcast %1 : i32 to vector<8x128xi32>
    %8 = arith.xori %6, %7 : vector<8x128xi32>
    %c16_i32 = arith.constant 16 : i32
    %9 = vector.broadcast %c16_i32 : i32 to vector<8x128xi32>
    %10 = arith.shrui %8, %9 : vector<8x128xi32>
    %11 = arith.xori %8, %10 : vector<8x128xi32>
    %c2146121005_i32 = arith.constant 2146121005 : i32
    %12 = vector.broadcast %c2146121005_i32 : i32 to vector<8x128xi32>
    %13 = arith.muli %11, %12 : vector<8x128xi32>
    %c15_i32 = arith.constant 15 : i32
    %14 = vector.broadcast %c15_i32 : i32 to vector<8x128xi32>
    %15 = arith.shrui %13, %14 : vector<8x128xi32>
    %16 = arith.xori %13, %15 : vector<8x128xi32>
    %c-2073254261_i32 = arith.constant -2073254261 : i32
    %17 = vector.broadcast %c-2073254261_i32 : i32 to vector<8x128xi32>
    %18 = arith.muli %16, %17 : vector<8x128xi32>
    %c16_i32_0 = arith.constant 16 : i32
    %19 = vector.broadcast %c16_i32_0 : i32 to vector<8x128xi32>
    %20 = arith.shrui %18, %19 : vector<8x128xi32>
    %21 = arith.xori %18, %20 : vector<8x128xi32>
    %c16_i32_1 = arith.constant 16 : i32
    %22 = vector.broadcast %c16_i32_1 : i32 to vector<8x128xi32>
    %23 = arith.shrui %21, %22 : vector<8x128xi32>
    %c65535_i32 = arith.constant 65535 : i32
    %24 = vector.broadcast %c65535_i32 : i32 to vector<8x128xi32>
    %25 = arith.andi %21, %24 : vector<8x128xi32>
    %26 = arith.sitofp %23 : vector<8x128xi32> to vector<8x128xf32>
    %cst = arith.constant 5.000000e-01 : f32
    %27 = vector.broadcast %cst : f32 to vector<8x128xf32>
    %28 = arith.addf %26, %27 : vector<8x128xf32>
    %cst_2 = arith.constant 1.52587891E-5 : f32
    %29 = vector.broadcast %cst_2 : f32 to vector<8x128xf32>
    %30 = arith.mulf %28, %29 : vector<8x128xf32>
    %31 = arith.sitofp %25 : vector<8x128xi32> to vector<8x128xf32>
    %cst_3 = arith.constant 5.000000e-01 : f32
    %32 = vector.broadcast %cst_3 : f32 to vector<8x128xf32>
    %33 = arith.addf %31, %32 : vector<8x128xf32>
    %cst_4 = arith.constant 1.52587891E-5 : f32
    %34 = vector.broadcast %cst_4 : f32 to vector<8x128xf32>
    %35 = arith.mulf %33, %34 : vector<8x128xf32>
    %36 = math.log %30 : vector<8x128xf32>
    %cst_5 = arith.constant -2.000000e+00 : f32
    %37 = vector.broadcast %cst_5 : f32 to vector<8x128xf32>
    %38 = arith.mulf %37, %36 : vector<8x128xf32>
    %39 = math.sqrt %38 : vector<8x128xf32>
    %cst_6 = arith.constant 5.000000e-01 : f32
    %40 = vector.broadcast %cst_6 : f32 to vector<8x128xf32>
    %41 = arith.subf %35, %40 : vector<8x128xf32>
    %42 = arith.mulf %41, %41 : vector<8x128xf32>
    %cst_7 = arith.constant 7.90353632 : f32
    %43 = vector.broadcast %cst_7 : f32 to vector<8x128xf32>
    %44 = arith.mulf %43, %42 : vector<8x128xf32>
    %cst_8 = arith.constant -26.4262562 : f32
    %45 = vector.broadcast %cst_8 : f32 to vector<8x128xf32>
    %46 = arith.addf %44, %45 : vector<8x128xf32>
    %cst_9 = arith.constant 3.81995249 : f32
    %47 = vector.broadcast %cst_9 : f32 to vector<8x128xf32>
    %48 = arith.mulf %47, %42 : vector<8x128xf32>
    %cst_10 = arith.constant -15.0946426 : f32
    %49 = vector.broadcast %cst_10 : f32 to vector<8x128xf32>
    %50 = arith.addf %48, %49 : vector<8x128xf32>
    %51 = arith.mulf %46, %42 : vector<8x128xf32>
    %cst_11 = arith.constant 60.2446404 : f32
    %52 = vector.broadcast %cst_11 : f32 to vector<8x128xf32>
    %53 = arith.addf %51, %52 : vector<8x128xf32>
    %54 = arith.mulf %50, %42 : vector<8x128xf32>
    %cst_12 = arith.constant 42.0586929 : f32
    %55 = vector.broadcast %cst_12 : f32 to vector<8x128xf32>
    %56 = arith.addf %54, %55 : vector<8x128xf32>
    %57 = arith.mulf %53, %42 : vector<8x128xf32>
    %cst_13 = arith.constant -85.4568176 : f32
    %58 = vector.broadcast %cst_13 : f32 to vector<8x128xf32>
    %59 = arith.addf %57, %58 : vector<8x128xf32>
    %60 = arith.mulf %56, %42 : vector<8x128xf32>
    %cst_14 = arith.constant -76.7058563 : f32
    %61 = vector.broadcast %cst_14 : f32 to vector<8x128xf32>
    %62 = arith.addf %60, %61 : vector<8x128xf32>
    %63 = arith.mulf %59, %42 : vector<8x128xf32>
    %cst_15 = arith.constant 64.9393921 : f32
    %64 = vector.broadcast %cst_15 : f32 to vector<8x128xf32>
    %65 = arith.addf %63, %64 : vector<8x128xf32>
    %66 = arith.mulf %62, %42 : vector<8x128xf32>
    %cst_16 = arith.constant 81.6052475 : f32
    %67 = vector.broadcast %cst_16 : f32 to vector<8x128xf32>
    %68 = arith.addf %66, %67 : vector<8x128xf32>
    %69 = arith.mulf %65, %42 : vector<8x128xf32>
    %cst_17 = arith.constant -19.7392082 : f32
    %70 = vector.broadcast %cst_17 : f32 to vector<8x128xf32>
    %71 = arith.addf %69, %70 : vector<8x128xf32>
    %72 = arith.mulf %68, %42 : vector<8x128xf32>
    %cst_18 = arith.constant -4.134170e+01 : f32
    %73 = vector.broadcast %cst_18 : f32 to vector<8x128xf32>
    %74 = arith.addf %72, %73 : vector<8x128xf32>
    %75 = arith.mulf %71, %42 : vector<8x128xf32>
    %cst_19 = arith.constant 1.000000e+00 : f32
    %76 = vector.broadcast %cst_19 : f32 to vector<8x128xf32>
    %77 = arith.addf %75, %76 : vector<8x128xf32>
    %78 = arith.mulf %74, %42 : vector<8x128xf32>
    %cst_20 = arith.constant 6.28318548 : f32
    %79 = vector.broadcast %cst_20 : f32 to vector<8x128xf32>
    %80 = arith.addf %78, %79 : vector<8x128xf32>
    %81 = arith.mulf %80, %41 : vector<8x128xf32>
    %82 = arith.mulf %39, %77 : vector<8x128xf32>
    %83 = arith.mulf %39, %81 : vector<8x128xf32>
    %c0 = arith.constant 0 : index
    %c0_21 = arith.constant 0 : index
    %84 = vector.load %arg2[%c0, %c0_21] : memref<16x128xf32, #tpu.memory_space<vmem>>, vector<8x128xf32>
    %c8 = arith.constant 8 : index
    %c0_22 = arith.constant 0 : index
    %85 = vector.load %arg2[%c8, %c0_22] : memref<16x128xf32, #tpu.memory_space<vmem>>, vector<8x128xf32>
    %cst_23 = arith.constant 1.000000e-01 : f32
    %86 = vector.broadcast %cst_23 : f32 to vector<8x128xf32>
    %87 = arith.mulf %86, %82 : vector<8x128xf32>
    %cst_24 = arith.constant 1.000000e+00 : f32
    %88 = vector.broadcast %cst_24 : f32 to vector<8x128xf32>
    %89 = arith.addf %88, %87 : vector<8x128xf32>
    %90 = arith.mulf %84, %89 : vector<8x128xf32>
    %c0_25 = arith.constant 0 : index
    %c0_26 = arith.constant 0 : index
    %91 = vector.load %arg3[%c0_25, %c0_26] : memref<16x128xf32, #tpu.memory_space<vmem>>, vector<8x128xf32>
    tpu.vector_store %arg3[%c0_25, %c0_26], %90 {strides = array<i32>} : memref<16x128xf32, #tpu.memory_space<vmem>>, vector<8x128xf32>,
    %cst_27 = arith.constant 1.000000e-01 : f32
    %92 = vector.broadcast %cst_27 : f32 to vector<8x128xf32>
    %93 = arith.mulf %92, %83 : vector<8x128xf32>
    %cst_28 = arith.constant 1.000000e+00 : f32
    %94 = vector.broadcast %cst_28 : f32 to vector<8x128xf32>
    %95 = arith.addf %94, %93 : vector<8x128xf32>
    %96 = arith.mulf %85, %95 : vector<8x128xf32>
    %c8_29 = arith.constant 8 : index
    %c0_30 = arith.constant 0 : index
    %97 = vector.load %arg3[%c8_29, %c0_30] : memref<16x128xf32, #tpu.memory_space<vmem>>, vector<8x128xf32>
    tpu.vector_store %arg3[%c8_29, %c0_30], %96 {strides = array<i32>} : memref<16x128xf32, #tpu.memory_space<vmem>>, vector<8x128xf32>,
    return
  }
  func.func @transform_0(%arg0: i32, %arg1: memref<1xi32, #tpu.memory_space<smem>>) -> (i32, i32) {
    %c0_i32 = arith.constant 0 : i32
    %c0_i32_0 = arith.constant 0 : i32
    return %arg0, %c0_i32 : i32, i32
  }
  func.func @transform_1(%arg0: i32, %arg1: memref<1xi32, #tpu.memory_space<smem>>) -> (i32, i32) {
    %c0_i32 = arith.constant 0 : i32
    %c0_i32_0 = arith.constant 0 : i32
    return %arg0, %c0_i32 : i32, i32
  }
}

</mosaic_0001>

<llo_original>
// kernel: tpu_custom_call.1
$region0: #{tpu_custom_call.1}
  #allocation0 [shape = 'u32[]', space=smem, size = 0x4, offset = 0x4, fixed_abs, tag = 'smem constant byte address 0x4 - core index']
  #allocation1 [shape = 'u32[144,128]{1,0:T(1,128)}', space=vmem, size = 0x12000, scoped, tag = 'internal scratch']
  #allocation2 [shape = 's32[1]{0}', space=sflag, size = 0x4, scoped, tag = 'scoped memory for tpu_custom_call.1']
  #allocation3 [shape = 's32[1]{0:T(128)S(6)}', space=smem, size = 0x200, scoped, tag = 'prefetched SMEM operand 0']
  %s0 = inlined_call_operand.<no memory space> [shape: s32[1], index: 0, kind: input, shape index: {}]
  %s1 = inlined_call_operand.hbm [shape: f32[16,128], index: 1, kind: input, shape index: {}]
  %s2 = inlined_call_operand.hbm [shape: f32[16,128], index: 2, kind: output, shape index: {}]
  %s3 = sld [smem:[#allocation0]]
  $region18: #{tpu_custom_call.1} parent=0
    _
  %s5 = ssub.s32 1, %s3
  %s6 = scalar_select 0, %s5, %s3
  %7 = sst [smem:[#allocation3]] %s0
  $region1: #{tpu_custom_call.1} parent=0
    #allocation4 [shape = 'u8[8192]{0}', space=vmem, size = 0x2000, scoped, tag = 'input window, operand 1, single buffered']
    #allocation5 [shape = 's32[1]{0}', space=sflag, size = 0x4, scoped, tag = 'scoped memory for tpu_custom_call.1']
    #allocation6 [shape = 's32[1]{0}', space=sflag, size = 0x4, scoped, tag = 'scoped memory for tpu_custom_call.1']
    #allocation7 [shape = 'u8[8192]{0}', space=vmem, size = 0x2000, scoped, tag = 'output window, operand 0, single buffered']
    %8 = vsyncpa [#allocation5], 0
    %9 = vsyncpa [#allocation6], 0
    // Predicated region
    $region2: #{tpu_custom_call.1} parent=1 // pred_check
      _
    $region3: #{tpu_custom_call.1} parent=1 // pred_check_branch
      %11 = sbr.rel (0) target = $region5
    $region4: #{tpu_custom_call.1} parent=1 // pred_region
      %s13 = ssub.s32 256, 256
      %14 = vsyncadd [#allocation5], %s13
      %s15 = sshll.u32 [#allocation4], 4
      %s16 = int_to_ptr.vmem [resolvable:$true] %s15
      %21 = dma.hbm_to_vmem [thread:$0]  %s1, 256, %s16, [#allocation5], 128, 128, 8
    $region5: #{tpu_custom_call.1} parent=1 // pred_fallthru
      _
    // Predicated region
    $region6: #{tpu_custom_call.1} parent=1 // pred_check
      _
    $region7: #{tpu_custom_call.1} parent=1 // pred_check_branch
      %23 = sbr.rel (0) target = $region9
    $region8: #{tpu_custom_call.1} parent=1 // pred_region
      %24 = dma.done [#allocation5], 256
    $region9: #{tpu_custom_call.1} parent=1 // pred_fallthru
      _
    %s25 = sld [smem:[#allocation3]]
    %v26 = vlaneseq
    %v27 = vshrl.u32 %v26, 7
    %v28 = vlaneseq
    %v29 = vand.u32 %v28, 127
    %v30 = vshll.u32 %v27, 7
    %v31 = vor.u32 %v30, %v29
    %v32 = vstv %s25
    %v33 = vxor.u32 %v31, %v32
    %v34 = vshrl.u32 %v33, 16
    %v35 = vxor.u32 %v33, %v34
    %v36 = vmul.u32 %v35, 2146121005
    %v37 = vshrl.u32 %v36, 15
    %v38 = vxor.u32 %v36, %v37
    %v39 = vmul.u32 %v38, 2221713035
    %v40 = vshrl.u32 %v39, 16
    %v41 = vxor.u32 %v39, %v40
    %v42 = vshrl.u32 %v41, 16
    %v43 = vand.u32 %v41, 65535
    %v44 = vcvt.s32.f32 %v42
    %v45 = vadd.f32 %v44, 0.5
    %v46 = vmul.f32 %v45, 1.5258789e-05
    %v47 = vcvt.s32.f32 %v43
    %v48 = vadd.f32 %v47, 0.5
    %v49 = vmul.f32 %v48, 1.5258789e-05
    %v50 = vlog2.pop %v46
    %v51 = vmul.f32 %v50, 0.6931472
    %v52 = vmul.f32 %v51, -2.0
    %v53 = vrsqrt.pop %v52
    %v54 = vmul.f32 %v52, %v53
    %vm55 = vcmp.eq.f32.partialorder %v52, inf
    %v56 = vsel %vm55, %v52, %v54
    %vm57 = vcmp.eq.f32.partialorder %v52, 0.0
    %v58 = vand.u32 %v52, 2147483648
    %v59 = vsel %vm57, %v58, %v56
    %v60 = vsub.f32 %v49, 0.5
    %v61 = vmul.f32 %v60, %v60
    %v62 = vmul.f32 %v61, 7.9035363
    %v63 = vadd.f32 %v62, -26.426256
    %v64 = vmul.f32 %v61, 3.8199525
    %v65 = vadd.f32 %v64, -15.094643
    %v66 = vmul.f32 %v63, %v61
    %v67 = vadd.f32 %v66, 60.24464
    %v68 = vmul.f32 %v65, %v61
    %v69 = vadd.f32 %v68, 42.058693
    %v70 = vmul.f32 %v67, %v61
    %v71 = vadd.f32 %v70, -85.45682
    %v72 = vmul.f32 %v69, %v61
    %v73 = vadd.f32 %v72, -76.70586
    %v74 = vmul.f32 %v71, %v61
    %v75 = vadd.f32 %v74, 64.93939
    %v76 = vmul.f32 %v73, %v61
    %v77 = vadd.f32 %v76, 81.60525
    %v78 = vmul.f32 %v75, %v61
    %v79 = vadd.f32 %v78, -19.739208
    %v80 = vmul.f32 %v77, %v61
    %v81 = vadd.f32 %v80, -41.3417
    %v82 = vmul.f32 %v79, %v61
    %v83 = vadd.f32 %v82, 1.0
    %v84 = vmul.f32 %v81, %v61
    %v85 = vadd.f32 %v84, 6.2831855
    %v86 = vmul.f32 %v85, %v60
    %v87 = vmul.f32 %v59, %v83
    %v88 = vmul.f32 %v59, %v86
    %v89 = vld [vmem:[#allocation4] sm:$0xff]
    %v90 = vld [vmem:[#allocation4 + $0x8] sm:$0xff]
    %v91 = vmul.f32 %v87, 0.1
    %v92 = vadd.f32 %v91, 1.0
    %v93 = vmul.f32 %v89, %v92
    %94 = vst [vmem:[#allocation7] sm:$0xff] %v93
    %v95 = vmul.f32 %v88, 0.1
    %v96 = vadd.f32 %v95, 1.0
    %v97 = vmul.f32 %v90, %v96
    %98 = vst [vmem:[#allocation7 + $0x8] sm:$0xff] %v97
    // Predicated region
    $region10: #{tpu_custom_call.1} parent=1 // pred_check
      _
    $region11: #{tpu_custom_call.1} parent=1 // pred_check_branch
      %100 = sbr.rel (0) target = $region13
    $region12: #{tpu_custom_call.1} parent=1 // pred_region
      %s102 = ssub.s32 256, 256
      %103 = vsyncadd [#allocation6], %s102
      %s104 = sshll.u32 [#allocation7], 4
      %s105 = int_to_ptr.vmem [resolvable:$true] %s104
      %110 = dma.vmem_to_hbm [thread:$0]  %s105, 256, %s2, [#allocation6], 128, 128, 8
    $region13: #{tpu_custom_call.1} parent=1 // pred_fallthru
      _
    // Predicated region
    $region14: #{tpu_custom_call.1} parent=1 // pred_check
      _
    $region15: #{tpu_custom_call.1} parent=1 // pred_check_branch
      %112 = sbr.rel (0) target = $region17
    $region16: #{tpu_custom_call.1} parent=1 // pred_region
      %113 = dma.done [#allocation6], 256
    $region17: #{tpu_custom_call.1} parent=1 // pred_fallthru
      _
    %114 = vsyncpa [#allocation5], 1
    %115 = vsyncpa [#allocation6], 1

</llo_original>
